<compile_context>
chip_gen: v7x
topology: tpu7x:2x2x1
jax: 0.10.0
libtpu: 0.0.40
codegen_flags: <defaults>
</compile_context>

<pallas_src>
import functools

import jax
import jax.numpy as jnp
from jax.experimental import pallas as pl
from jax.experimental.pallas import tpu as pltpu


def _gelu_exact(x):
    # PyTorch nn.GELU() default = exact (erf) formulation.
    return 0.5 * x * (1.0 + jax.lax.erf(x * 0.7071067811865476))


def _layernorm_lanes(x, gamma, beta, n_true, eps=1e-5):
    # x is f32 with zeros in lanes >= n_true, so plain lane sums give statistics
    # over the true channels when divided by n_true (E[x^2] - mean^2 form avoids
    # an explicit lane mask).  Matches PyTorch's biased-variance LayerNorm.
    inv_n = jnp.float32(1.0 / n_true)
    mean = jnp.sum(x, axis=-1, keepdims=True) * inv_n
    ex2 = jnp.sum(x * x, axis=-1, keepdims=True) * inv_n
    var = ex2 - mean * mean
    inv = jax.lax.rsqrt(var + jnp.float32(eps))
    return (x - mean) * inv * gamma + beta


def _layernorm_lastdim(x, gamma, beta, eps=1e-5):
    # two-pass formulation (reference only)
    mean = jnp.mean(x, axis=-1, keepdims=True)
    var = jnp.mean(jnp.square(x - mean), axis=-1, keepdims=True)
    return (x - mean) * jax.lax.rsqrt(var + eps) * gamma + beta


def _round_up(x, m):
    return (x + m - 1) // m * m


def double_point_conv_kernel(x_ref, dww_ref, dwb_ref, g1_ref, b1_ref,
                             pwwT_ref, pwb_ref, g2_ref, b2_ref, o_ref,
                             *, TL, K, C_in, C_out, mxu_dtype):
    # x_ref: (1, 1, TL + K - 1, Cp_in) halo'd input tile for one (batch, L-tile).

    # --- depthwise Conv1d (groups=C_in, 'same'): K shifted windows read straight
    #     from the ref.  K is small & static -> the loop is unrolled at trace
    #     time, so every weight-row broadcast appears exactly once.
    acc = x_ref[0, 0, 0:TL, :].astype(jnp.float32) * dww_ref[0:1, :]
    for j in range(1, K):
        acc = acc + x_ref[0, 0, j:j + TL, :].astype(jnp.float32) * dww_ref[j:j + 1, :]
    h = acc + dwb_ref[...]                                      # (TL, Cp_in) f32

    # --- GELU + LayerNorm over (true) channels ---
    h = _gelu_exact(h)
    h = _layernorm_lanes(h, g1_ref[...], b1_ref[...], C_in)

    # --- pointwise (kernel_size=1) Conv1d == one MXU matmul per tile ---
    y = jnp.dot(h.astype(mxu_dtype), pwwT_ref[...],
                preferred_element_type=jnp.float32)             # (TL, Cp_out)
    y = y + pwb_ref[...]

    # --- GELU + LayerNorm over (true) channels ---
    y = _gelu_exact(y)
    y = _layernorm_lanes(y, g2_ref[...], b2_ref[...], C_out)

    o_ref[0] = y.astype(o_ref.dtype)                            # lane-dense store


def _choose_tile_l(L, Cp_in, Cp_out, itemsize):
    """Largest L-tile that keeps the double-buffered working set ~<= 8 MiB."""
    if L <= 256:
        return _round_up(L, 8)                 # one tile, sublane-aligned
    # double-buffered input/output tiles + f32 per-tile intermediates (h, y)
    per_row = 2 * Cp_in * itemsize + 2 * Cp_out * itemsize + 4 * (Cp_in + Cp_out)
    budget = 8 * 1024 * 1024                   # well under 16/32 MiB scoped VMEM
    tl = max(256, (budget // per_row) // 256 * 256)   # multiples of 256 feed the MXU
    return int(min(tl, _round_up(L, 256)))


def double_point_conv(x_ncl, params, kernel_size):
    """Pallas implementation of DoublePointConv.forward.  x_ncl: (B, C_in, L)."""
    B, C_in, L = x_ncl.shape
    K = kernel_size
    assert K % 2 == 1, "use odd kernel_size so 'same' padding is symmetric"
    pad = (K - 1) // 2
    C_out = params["pw_w"].shape[0]

    # lane-dense channel padding
    Cp_in = _round_up(C_in, 128)
    Cp_out = _round_up(C_out, 128)

    itemsize = x_ncl.dtype.itemsize
    TL = _choose_tile_l(L, Cp_in, Cp_out, itemsize)
    Lpad = _round_up(L, TL)
    nL = Lpad // TL
    TLh = TL + K - 1

    use_bf16_mxu = x_ncl.dtype == jnp.bfloat16     # keep f32 numerics for f32 inputs
    f32 = jnp.float32
    mxu_dtype = jnp.bfloat16 if use_bf16_mxu else f32

    # --- wrapper glue (one fused XLA pass): NCL -> BLC, zero pad ('same' halo,
    #     L round-up, channel lanes), then per-tile halo windows.
    x_blc = jnp.transpose(x_ncl, (0, 2, 1))                     # (B, L, C_in)
    x_blc = jnp.pad(x_blc, ((0, 0), (pad, pad + Lpad - L), (0, Cp_in - C_in)))
    x_tiles = jnp.stack([x_blc[:, i * TL:i * TL + TLh, :] for i in range(nL)],
                        axis=1)                                 # (B, nL, TLh, Cp_in)

    # parameters, zero-padded into the lane-padded channel space
    dww = jnp.zeros((K, Cp_in), f32).at[:, :C_in].set(
        jnp.transpose(params["dw_w"][:, 0, :], (1, 0)).astype(f32))
    dwb = jnp.zeros((1, Cp_in), f32).at[:, :C_in].set(params["dw_b"].astype(f32))
    g1 = jnp.zeros((1, Cp_in), f32).at[:, :C_in].set(params["ln1_g"].astype(f32))
    b1 = jnp.zeros((1, Cp_in), f32).at[:, :C_in].set(params["ln1_b"].astype(f32))
    pwwT = jnp.zeros((Cp_in, Cp_out), mxu_dtype).at[:C_in, :C_out].set(
        jnp.transpose(params["pw_w"][:, :, 0], (1, 0)).astype(mxu_dtype))
    pwb = jnp.zeros((1, Cp_out), f32).at[:, :C_out].set(params["pw_b"].astype(f32))
    g2 = jnp.zeros((1, Cp_out), f32).at[:, :C_out].set(params["ln2_g"].astype(f32))
    b2 = jnp.zeros((1, Cp_out), f32).at[:, :C_out].set(params["ln2_b"].astype(f32))

    kernel = functools.partial(double_point_conv_kernel, TL=TL, K=K,
                               C_in=C_in, C_out=C_out, mxu_dtype=mxu_dtype)

    out = pl.pallas_call(
        kernel,
        out_shape=jax.ShapeDtypeStruct((B, Lpad, Cp_out), x_ncl.dtype),
        grid_spec=pltpu.PrefetchScalarGridSpec(
            num_scalar_prefetch=0,
            grid=(B, nL),
            in_specs=[
                pl.BlockSpec((1, 1, TLh, Cp_in), lambda b, l: (b, l, 0, 0)),  # halo tile
                pl.BlockSpec((K, Cp_in), lambda b, l: (0, 0)),                # depthwise W
                pl.BlockSpec((1, Cp_in), lambda b, l: (0, 0)),                # depthwise b
                pl.BlockSpec((1, Cp_in), lambda b, l: (0, 0)),                # LN1 gamma
                pl.BlockSpec((1, Cp_in), lambda b, l: (0, 0)),                # LN1 beta
                pl.BlockSpec((Cp_in, Cp_out), lambda b, l: (0, 0)),           # pointwise W^T
                pl.BlockSpec((1, Cp_out), lambda b, l: (0, 0)),               # pointwise b
                pl.BlockSpec((1, Cp_out), lambda b, l: (0, 0)),               # LN2 gamma
                pl.BlockSpec((1, Cp_out), lambda b, l: (0, 0)),               # LN2 beta
            ],
            out_specs=pl.BlockSpec((1, TL, Cp_out), lambda b, l: (b, l, 0)),
        ),
        compiler_params=pltpu.CompilerParams(
            dimension_semantics=("parallel", "parallel"),
            vmem_limit_bytes=32 * 1024 * 1024,
        ),
    )(x_tiles, dww, dwb, g1, b1, pwwT, pwb, g2, b2)

    # slice off lane/L padding and return NCL to match the module interface
    return jnp.transpose(out[:, :L, :C_out], (0, 2, 1))         # (B, C_out, L)


def reference(x_ncl, params, kernel_size):
    """Pure-JAX reference mirroring the PyTorch forward."""
    B, C_in, L = x_ncl.shape
    K = kernel_size
    pad = (K - 1) // 2
    x = jnp.transpose(x_ncl, (0, 2, 1))
    xp = jnp.pad(x, ((0, 0), (pad, pad), (0, 0)))
    dww = params["dw_w"][:, 0, :]                              # (C_in, K)
    h = sum(xp[:, j:j + L, :] * dww[:, j][None, None, :] for j in range(K))
    h = h + params["dw_b"]
    h = _gelu_exact(h)
    h = _layernorm_lastdim(h, params["ln1_g"], params["ln1_b"])
    y = jnp.einsum("blc,oc->blo", h, params["pw_w"][:, :, 0]) + params["pw_b"]
    y = _gelu_exact(y)
    y = _layernorm_lastdim(y, params["ln2_g"], params["ln2_b"])
    return jnp.transpose(y, (0, 2, 1))


if __name__ == "__main__":
    B, C_in, C_out, L, K = 2, 8, 16, 16, 3

    key = jax.random.PRNGKey(0)
    k0, k1, k2, k3, k4 = jax.random.split(key, 5)

    # deterministic parameter init (shapes as in the module's __init__)
    params = {
        "dw_w": 0.1 * jax.random.normal(k0, (C_in, 1, K), jnp.float32),     # Conv1d groups=C_in
        "dw_b": 0.1 * jax.random.normal(k1, (C_in,), jnp.float32),
        "ln1_g": jnp.ones((C_in,), jnp.float32),                            # LayerNorm(C_in)
        "ln1_b": jnp.zeros((C_in,), jnp.float32),
        "pw_w": 0.1 * jax.random.normal(k2, (C_out, C_in, 1), jnp.float32), # Conv1d 1x1
        "pw_b": 0.1 * jax.random.normal(k3, (C_out,), jnp.float32),
        "ln2_g": jnp.ones((C_out,), jnp.float32),                           # LayerNorm(C_out)
        "ln2_b": jnp.zeros((C_out,), jnp.float32),
    }

    x = jax.random.normal(k4, (B, C_in, L), jnp.float32)

    out = double_point_conv(x, params, K)
    out = jax.block_until_ready(out)

    ref = reference(x, params, K)
    assert out.shape == (B, C_out, L)
    assert jnp.allclose(out, ref, rtol=1e-4, atol=1e-4)

    print("KERNEL_OK")
</pallas_src>

<mosaic_0001>
module attributes {stable_mosaic.version = 11 : i64} {
  func.func @double_point_conv_kernel(%arg0: i32, %arg1: i32, %arg2: memref<1x1x18x128xf32, #tpu.memory_space<vmem>>, %arg3: memref<3x128xf32, #tpu.memory_space<vmem>>, %arg4: memref<1x128xf32, #tpu.memory_space<vmem>>, %arg5: memref<1x128xf32, #tpu.memory_space<vmem>>, %arg6: memref<1x128xf32, #tpu.memory_space<vmem>>, %arg7: memref<128x128xf32, #tpu.memory_space<vmem>>, %arg8: memref<1x128xf32, #tpu.memory_space<vmem>>, %arg9: memref<1x128xf32, #tpu.memory_space<vmem>>, %arg10: memref<1x128xf32, #tpu.memory_space<vmem>>, %arg11: memref<1x16x128xf32, #tpu.memory_space<vmem>>) attributes {dimension_semantics = [#tpu.dimension_semantics<parallel>, #tpu.dimension_semantics<parallel>], iteration_bounds = array<i64: 2, 1>, scalar_prefetch = 0 : i64, scratch_operands = 0 : i64, tpu.core_type = #tpu.core_type<tc>, window_params = [{transform_indices = @transform_0, window_bounds = array<i64: 1, 1, 18, 128>}, {pipeline_mode = #tpu.pipeline_mode<synchronous>, transform_indices = @transform_1, window_bounds = array<i64: 3, 128>}, {pipeline_mode = #tpu.pipeline_mode<synchronous>, transform_indices = @transform_2, window_bounds = array<i64: 1, 128>}, {pipeline_mode = #tpu.pipeline_mode<synchronous>, transform_indices = @transform_3, window_bounds = array<i64: 1, 128>}, {pipeline_mode = #tpu.pipeline_mode<synchronous>, transform_indices = @transform_4, window_bounds = array<i64: 1, 128>}, {pipeline_mode = #tpu.pipeline_mode<synchronous>, transform_indices = @transform_5, window_bounds = array<i64: 128, 128>}, {pipeline_mode = #tpu.pipeline_mode<synchronous>, transform_indices = @transform_6, window_bounds = array<i64: 1, 128>}, {pipeline_mode = #tpu.pipeline_mode<synchronous>, transform_indices = @transform_7, window_bounds = array<i64: 1, 128>}, {pipeline_mode = #tpu.pipeline_mode<synchronous>, transform_indices = @transform_8, window_bounds = array<i64: 1, 128>}, {transform_indices = @transform_9, window_bounds = array<i64: 1, 16, 128>}]} {
    %c0 = arith.constant 0 : index
    %c0_0 = arith.constant 0 : index
    %c0_1 = arith.constant 0 : index
    %c0_2 = arith.constant 0 : index
    %0 = vector.load %arg2[%c0, %c0_0, %c0_1, %c0_2] : memref<1x1x18x128xf32, #tpu.memory_space<vmem>>, vector<1x1x16x128xf32>
    %1 = vector.shape_cast %0 : vector<1x1x16x128xf32> to vector<16x128xf32>
    %c0_3 = arith.constant 0 : index
    %c0_4 = arith.constant 0 : index
    %2 = vector.load %arg3[%c0_3, %c0_4] : memref<3x128xf32, #tpu.memory_space<vmem>>, vector<1x128xf32>
    %3 = vector.broadcast %2 : vector<1x128xf32> to vector<16x128xf32>
    %4 = arith.mulf %1, %3 : vector<16x128xf32>
    %c0_5 = arith.constant 0 : index
    %c0_6 = arith.constant 0 : index
    %c1 = arith.constant 1 : index
    %c0_7 = arith.constant 0 : index
    %5 = vector.load %arg2[%c0_5, %c0_6, %c1, %c0_7] : memref<1x1x18x128xf32, #tpu.memory_space<vmem>>, vector<1x1x16x128xf32>
    %6 = vector.shape_cast %5 : vector<1x1x16x128xf32> to vector<16x128xf32>
    %c1_8 = arith.constant 1 : index
    %c0_9 = arith.constant 0 : index
    %7 = vector.load %arg3[%c1_8, %c0_9] : memref<3x128xf32, #tpu.memory_space<vmem>>, vector<1x128xf32>
    %8 = vector.broadcast %7 : vector<1x128xf32> to vector<16x128xf32>
    %9 = arith.mulf %6, %8 : vector<16x128xf32>
    %10 = arith.addf %4, %9 : vector<16x128xf32>
    %c0_10 = arith.constant 0 : index
    %c0_11 = arith.constant 0 : index
    %c2 = arith.constant 2 : index
    %c0_12 = arith.constant 0 : index
    %11 = vector.load %arg2[%c0_10, %c0_11, %c2, %c0_12] : memref<1x1x18x128xf32, #tpu.memory_space<vmem>>, vector<1x1x16x128xf32>
    %12 = vector.shape_cast %11 : vector<1x1x16x128xf32> to vector<16x128xf32>
    %c2_13 = arith.constant 2 : index
    %c0_14 = arith.constant 0 : index
    %13 = vector.load %arg3[%c2_13, %c0_14] : memref<3x128xf32, #tpu.memory_space<vmem>>, vector<1x128xf32>
    %14 = vector.broadcast %13 : vector<1x128xf32> to vector<16x128xf32>
    %15 = arith.mulf %12, %14 : vector<16x128xf32>
    %16 = arith.addf %10, %15 : vector<16x128xf32>
    %c0_15 = arith.constant 0 : index
    %c0_16 = arith.constant 0 : index
    %17 = vector.load %arg4[%c0_15, %c0_16] : memref<1x128xf32, #tpu.memory_space<vmem>>, vector<1x128xf32>
    %18 = vector.broadcast %17 : vector<1x128xf32> to vector<16x128xf32>
    %19 = arith.addf %16, %18 : vector<16x128xf32>
    %cst = arith.constant 5.000000e-01 : f32
    %20 = vector.broadcast %cst : f32 to vector<16x128xf32>
    %21 = arith.mulf %20, %19 : vector<16x128xf32>
    %cst_17 = arith.constant 0.707106769 : f32
    %22 = vector.broadcast %cst_17 : f32 to vector<16x128xf32>
    %23 = arith.mulf %19, %22 : vector<16x128xf32>
    %24 = math.erf %23 : vector<16x128xf32>
    %cst_18 = arith.constant 1.000000e+00 : f32
    %25 = vector.broadcast %cst_18 : f32 to vector<16x128xf32>
    %26 = arith.addf %25, %24 : vector<16x128xf32>
    %27 = arith.mulf %21, %26 : vector<16x128xf32>
    %c0_19 = arith.constant 0 : index
    %c0_20 = arith.constant 0 : index
    %28 = vector.load %arg5[%c0_19, %c0_20] : memref<1x128xf32, #tpu.memory_space<vmem>>, vector<1x128xf32>
    %c0_21 = arith.constant 0 : index
    %c0_22 = arith.constant 0 : index
    %29 = vector.load %arg6[%c0_21, %c0_22] : memref<1x128xf32, #tpu.memory_space<vmem>>, vector<1x128xf32>
    %cst_23 = arith.constant dense<0.000000e+00> : vector<16xf32>
    %30 = vector.multi_reduction <add>, %27, %cst_23 [1] : vector<16x128xf32> to vector<16xf32>
    %31 = vector.shape_cast %30 : vector<16xf32> to vector<16x1xf32>
    %cst_24 = arith.constant 1.250000e-01 : f32
    %32 = vector.broadcast %cst_24 : f32 to vector<16x1xf32>
    %33 = arith.mulf %31, %32 : vector<16x1xf32>
    %34 = arith.mulf %27, %27 : vector<16x128xf32>
    %cst_25 = arith.constant dense<0.000000e+00> : vector<16xf32>
    %35 = vector.multi_reduction <add>, %34, %cst_25 [1] : vector<16x128xf32> to vector<16xf32>
    %36 = vector.shape_cast %35 : vector<16xf32> to vector<16x1xf32>
    %cst_26 = arith.constant 1.250000e-01 : f32
    %37 = vector.broadcast %cst_26 : f32 to vector<16x1xf32>
    %38 = arith.mulf %36, %37 : vector<16x1xf32>
    %39 = arith.mulf %33, %33 : vector<16x1xf32>
    %40 = arith.subf %38, %39 : vector<16x1xf32>
    %cst_27 = arith.constant 9.99999974E-6 : f32
    %41 = vector.broadcast %cst_27 : f32 to vector<16x1xf32>
    %42 = arith.addf %40, %41 : vector<16x1xf32>
    %43 = math.rsqrt %42 : vector<16x1xf32>
    %44 = vector.broadcast %33 : vector<16x1xf32> to vector<16x128xf32>
    %45 = arith.subf %27, %44 : vector<16x128xf32>
    %46 = vector.broadcast %43 : vector<16x1xf32> to vector<16x128xf32>
    %47 = arith.mulf %45, %46 : vector<16x128xf32>
    %48 = vector.broadcast %28 : vector<1x128xf32> to vector<16x128xf32>
    %49 = arith.mulf %47, %48 : vector<16x128xf32>
    %50 = vector.broadcast %29 : vector<1x128xf32> to vector<16x128xf32>
    %51 = arith.addf %49, %50 : vector<16x128xf32>
    %c0_28 = arith.constant 0 : index
    %c0_29 = arith.constant 0 : index
    %52 = vector.load %arg7[%c0_28, %c0_29] : memref<128x128xf32, #tpu.memory_space<vmem>>, vector<128x128xf32>
    %cst_30 = arith.constant dense<0.000000e+00> : vector<16x128xf32>
    %53 = tpu.matmul %51, %52, %cst_30 {dimension_numbers = #tpu.dot_dimension_numbers<[1], [0], [0], [1], [0, 0, 1, 1], [], []>} : vector<16x128xf32>, vector<128x128xf32>, vector<16x128xf32> -> vector<16x128xf32>
    %c0_31 = arith.constant 0 : index
    %c0_32 = arith.constant 0 : index
    %54 = vector.load %arg8[%c0_31, %c0_32] : memref<1x128xf32, #tpu.memory_space<vmem>>, vector<1x128xf32>
    %55 = vector.broadcast %54 : vector<1x128xf32> to vector<16x128xf32>
    %56 = arith.addf %53, %55 : vector<16x128xf32>
    %cst_33 = arith.constant 5.000000e-01 : f32
    %57 = vector.broadcast %cst_33 : f32 to vector<16x128xf32>
    %58 = arith.mulf %57, %56 : vector<16x128xf32>
    %cst_34 = arith.constant 0.707106769 : f32
    %59 = vector.broadcast %cst_34 : f32 to vector<16x128xf32>
    %60 = arith.mulf %56, %59 : vector<16x128xf32>
    %61 = math.erf %60 : vector<16x128xf32>
    %cst_35 = arith.constant 1.000000e+00 : f32
    %62 = vector.broadcast %cst_35 : f32 to vector<16x128xf32>
    %63 = arith.addf %62, %61 : vector<16x128xf32>
    %64 = arith.mulf %58, %63 : vector<16x128xf32>
    %c0_36 = arith.constant 0 : index
    %c0_37 = arith.constant 0 : index
    %65 = vector.load %arg9[%c0_36, %c0_37] : memref<1x128xf32, #tpu.memory_space<vmem>>, vector<1x128xf32>
    %c0_38 = arith.constant 0 : index
    %c0_39 = arith.constant 0 : index
    %66 = vector.load %arg10[%c0_38, %c0_39] : memref<1x128xf32, #tpu.memory_space<vmem>>, vector<1x128xf32>
    %cst_40 = arith.constant dense<0.000000e+00> : vector<16xf32>
    %67 = vector.multi_reduction <add>, %64, %cst_40 [1] : vector<16x128xf32> to vector<16xf32>
    %68 = vector.shape_cast %67 : vector<16xf32> to vector<16x1xf32>
    %cst_41 = arith.constant 6.250000e-02 : f32
    %69 = vector.broadcast %cst_41 : f32 to vector<16x1xf32>
    %70 = arith.mulf %68, %69 : vector<16x1xf32>
    %71 = arith.mulf %64, %64 : vector<16x128xf32>
    %cst_42 = arith.constant dense<0.000000e+00> : vector<16xf32>
    %72 = vector.multi_reduction <add>, %71, %cst_42 [1] : vector<16x128xf32> to vector<16xf32>
    %73 = vector.shape_cast %72 : vector<16xf32> to vector<16x1xf32>
    %cst_43 = arith.constant 6.250000e-02 : f32
    %74 = vector.broadcast %cst_43 : f32 to vector<16x1xf32>
    %75 = arith.mulf %73, %74 : vector<16x1xf32>
    %76 = arith.mulf %70, %70 : vector<16x1xf32>
    %77 = arith.subf %75, %76 : vector<16x1xf32>
    %cst_44 = arith.constant 9.99999974E-6 : f32
    %78 = vector.broadcast %cst_44 : f32 to vector<16x1xf32>
    %79 = arith.addf %77, %78 : vector<16x1xf32>
    %80 = math.rsqrt %79 : vector<16x1xf32>
    %81 = vector.broadcast %70 : vector<16x1xf32> to vector<16x128xf32>
    %82 = arith.subf %64, %81 : vector<16x128xf32>
    %83 = vector.broadcast %80 : vector<16x1xf32> to vector<16x128xf32>
    %84 = arith.mulf %82, %83 : vector<16x128xf32>
    %85 = vector.broadcast %65 : vector<1x128xf32> to vector<16x128xf32>
    %86 = arith.mulf %84, %85 : vector<16x128xf32>
    %87 = vector.broadcast %66 : vector<1x128xf32> to vector<16x128xf32>
    %88 = arith.addf %86, %87 : vector<16x128xf32>
    %c0_45 = arith.constant 0 : index
    %c0_46 = arith.constant 0 : index
    %c0_47 = arith.constant 0 : index
    %89 = vector.load %arg11[%c0_45, %c0_46, %c0_47] : memref<1x16x128xf32, #tpu.memory_space<vmem>>, vector<1x16x128xf32>
    %90 = vector.shape_cast %89 : vector<1x16x128xf32> to vector<16x128xf32>
    %91 = vector.shape_cast %88 : vector<16x128xf32> to vector<1x16x128xf32>
    tpu.vector_store %arg11[%c0_45, %c0_46, %c0_47], %91 {strides = array<i32>} : memref<1x16x128xf32, #tpu.memory_space<vmem>>, vector<1x16x128xf32>,
    return
  }
  func.func @transform_0(%arg0: i32, %arg1: i32) -> (i32, i32, i32, i32) {
    %c0_i32 = arith.constant 0 : i32
    %c0_i32_0 = arith.constant 0 : i32
    %c0_i32_1 = arith.constant 0 : i32
    return %arg0, %arg1, %c0_i32, %c0_i32_0 : i32, i32, i32, i32
  }
  func.func @transform_1(%arg0: i32, %arg1: i32) -> (i32, i32) {
    %c0_i32 = arith.constant 0 : i32
    %c0_i32_0 = arith.constant 0 : i32
    %c0_i32_1 = arith.constant 0 : i32
    return %c0_i32, %c0_i32_0 : i32, i32
  }
  func.func @transform_2(%arg0: i32, %arg1: i32) -> (i32, i32) {
    %c0_i32 = arith.constant 0 : i32
    %c0_i32_0 = arith.constant 0 : i32
    %c0_i32_1 = arith.constant 0 : i32
    return %c0_i32, %c0_i32_0 : i32, i32
  }
  func.func @transform_3(%arg0: i32, %arg1: i32) -> (i32, i32) {
    %c0_i32 = arith.constant 0 : i32
    %c0_i32_0 = arith.constant 0 : i32
    %c0_i32_1 = arith.constant 0 : i32
    return %c0_i32, %c0_i32_0 : i32, i32
  }
  func.func @transform_4(%arg0: i32, %arg1: i32) -> (i32, i32) {
    %c0_i32 = arith.constant 0 : i32
    %c0_i32_0 = arith.constant 0 : i32
    %c0_i32_1 = arith.constant 0 : i32
    return %c0_i32, %c0_i32_0 : i32, i32
  }
  func.func @transform_5(%arg0: i32, %arg1: i32) -> (i32, i32) {
    %c0_i32 = arith.constant 0 : i32
    %c0_i32_0 = arith.constant 0 : i32
    %c0_i32_1 = arith.constant 0 : i32
    return %c0_i32, %c0_i32_0 : i32, i32
  }
  func.func @transform_6(%arg0: i32, %arg1: i32) -> (i32, i32) {
    %c0_i32 = arith.constant 0 : i32
    %c0_i32_0 = arith.constant 0 : i32
    %c0_i32_1 = arith.constant 0 : i32
    return %c0_i32, %c0_i32_0 : i32, i32
  }
  func.func @transform_7(%arg0: i32, %arg1: i32) -> (i32, i32) {
    %c0_i32 = arith.constant 0 : i32
    %c0_i32_0 = arith.constant 0 : i32
    %c0_i32_1 = arith.constant 0 : i32
    return %c0_i32, %c0_i32_0 : i32, i32
  }
  func.func @transform_8(%arg0: i32, %arg1: i32) -> (i32, i32) {
    %c0_i32 = arith.constant 0 : i32
    %c0_i32_0 = arith.constant 0 : i32
    %c0_i32_1 = arith.constant 0 : i32
    return %c0_i32, %c0_i32_0 : i32, i32
  }
  func.func @transform_9(%arg0: i32, %arg1: i32) -> (i32, i32, i32) {
    %c0_i32 = arith.constant 0 : i32
    %c0_i32_0 = arith.constant 0 : i32
    return %arg0, %arg1, %c0_i32 : i32, i32, i32
  }
}

</mosaic_0001>

<llo_original>
// kernel: tpu_custom_call.1
$region0: #{tpu_custom_call.1}
  #allocation0 [shape = 'u32[]', space=smem, size = 0x4, offset = 0x4, fixed_abs, tag = 'smem constant byte address 0x4 - core index']
  #allocation1 [shape = 'u32[144,128]{1,0:T(1,128)}', space=vmem, size = 0x12000, scoped, tag = 'internal scratch']
  %s0 = inlined_call_operand.vmem [shape: f32[2,1,18,128], index: 0, kind: input, shape index: {}]
  %s1 = inlined_call_operand.vmem [shape: f32[3,128], index: 1, kind: input, shape index: {}]
  %s2 = inlined_call_operand.vmem [shape: f32[1,128], index: 2, kind: input, shape index: {}]
  %s3 = inlined_call_operand.vmem [shape: f32[1,128], index: 3, kind: input, shape index: {}]
  %s4 = inlined_call_operand.vmem [shape: f32[1,128], index: 4, kind: input, shape index: {}]
  %s5 = inlined_call_operand.hbm [shape: f32[128,128], index: 5, kind: input, shape index: {}]
  %s6 = inlined_call_operand.vmem [shape: f32[1,128], index: 6, kind: input, shape index: {}]
  %s7 = inlined_call_operand.vmem [shape: f32[1,128], index: 7, kind: input, shape index: {}]
  %s8 = inlined_call_operand.vmem [shape: f32[1,128], index: 8, kind: input, shape index: {}]
  %s9 = inlined_call_operand.hbm [shape: f32[2,16,128], index: 9, kind: output, shape index: {}]
  %s10 = sld [smem:[#allocation0]]
  $region73: #{tpu_custom_call.1} parent=0
    _
  %s12 = ssub.s32 1, %s10
  %s13 = scalar_select 0, %s12, %s10
  $region1: #{tpu_custom_call.1} parent=0
    #allocation2 [shape = 'u8[65536]{0}', space=vmem, size = 0x10000, scoped, tag = 'input window, operand 5, single buffered']
    #allocation3 [shape = 's32[2]{0}', space=sflag, size = 0x8, scoped, tag = 'scoped memory for tpu_custom_call.1']
    #allocation4 [shape = 's32[2]{0}', space=sflag, size = 0x8, scoped, tag = 'scoped memory for tpu_custom_call.1']
    #allocation5 [shape = 'u8[16384]{0}', space=vmem, size = 0x4000, scoped, tag = 'output window, operand 0']
    %14 = vsyncpa [#allocation3], 0
    %15 = vsyncpa [#allocation4], 0
    %s16 = scalar_lea.sflag [#allocation4], 1
    %17 = vsyncpa %s16, 0
    loop: start=0, step=1, limit=4
    $region2: #{tpu_custom_call.1} parent=1 // loop_pre_header
      _
    $region3: #{tpu_custom_call.1} parent=1 // loop_header
      %s19 = sphi 0, %s23
      %p20 = scmp.ge.s32.totalorder %s19, 4
      %s26 = sphi 0, %s38
      %s27 = sphi 0, %s34
      %s28 = sphi 0, %s26
      %s29 = sphi 0, %s27
      %s30 = sphi 0, %s28
      %s31 = sphi 0, %s29
      %s43 = sphi 0, %s45
      %s46 = sphi 0, %s43
      %s47 = sphi 0, %s46
      %s63 = sphi 0, %s47
      %s67 = sphi 0, %s67
      %s69 = sphi 0, %s67
      %s70 = sphi 0, %s69
      %s84 = sphi 0, %s70
      %s88 = sphi 0, %s88
      %s90 = sphi 0, %s88
      %s91 = sphi 0, %s90
      %s105 = sphi 0, %s91
      %s109 = sphi 0, %s109
      %s111 = sphi 0, %s109
      %s112 = sphi 0, %s111
      %s126 = sphi 0, %s112
      %s130 = sphi 0, %s130
      %s132 = sphi 0, %s130
      %s133 = sphi 0, %s132
      %s147 = sphi 0, %s133
      %s151 = sphi 0, %s151
      %s153 = sphi 0, %s151
      %s154 = sphi 0, %s153
      %s168 = sphi 0, %s154
      %s172 = sphi 0, %s172
      %s174 = sphi 0, %s172
      %s175 = sphi 0, %s174
      %s189 = sphi 0, %s175
      %s193 = sphi 0, %s193
      %s195 = sphi 0, %s193
      %s196 = sphi 0, %s195
      %s210 = sphi 0, %s196
      %s214 = sphi 0, %s214
      %s216 = sphi 0, %s214
      %s217 = sphi 0, %s216
      %s231 = sphi 0, %s217
      %s239 = sphi 0, %s241
      %s242 = sphi 0, %s239
      %s243 = sphi 0, %s242
      %s259 = sphi 0, %s243
    $region4: #{tpu_custom_call.1} parent=1 // loop_header_branch
      %22 = sbr.rel (%p20) target = $region8
    $region5: #{tpu_custom_call.1} parent=1 // loop_body
      %s24 = ssub.s32 %s19, 1
      %s25 = ssub.s32 %s19, 2
      %s32 = sadd.s32 1, %s27
      %p33 = scmp.ge.s32.totalorder %s32, 1
      %s34 = scalar_select %p33, 0, %s32
      %s35 = sadd.s32 1, %s26
      %s36 = scalar_select %p33, %s35, %s26
      %p37 = scmp.ge.s32.totalorder %s36, 2
      %s38 = scalar_select %p37, 0, %s36
      %s39 = ssub.s32 %s26, %s38
      %s40 = ssub.s32 %s27, %s34
      %s41 = sor.u32 %s39, %s40
      %p42 = scmp.eq.s32.totalorder %s41, 0
      %s44 = sadd.s32 %s43, 1
      %s45 = scalar_select %p42, %s43, %s44
      %p48 = pneg %p42
      %p49 = scmp.eq.s32.totalorder %s19, 1
      %p50 = por %p48, %p49
      %p51 = scmp.ne.s32.totalorder %s43, %s46
      %p52 = scmp.eq.s32.totalorder %s19, 0
      %p53 = por %p51, %p52
      %p54 = scmp.ne.s32.totalorder %s43, %s46
      %p55 = scmp.eq.s32.totalorder %s24, 1
      %p56 = por %p54, %p55
      %p57 = scmp.ne.s32.totalorder %s46, %s47
      %p58 = scmp.eq.s32.totalorder %s24, 0
      %p59 = por %p57, %p58
      %p60 = scmp.ne.s32.totalorder %s46, %s47
      %p61 = scmp.eq.s32.totalorder %s25, 1
      %p62 = por %p60, %p61
      %p64 = scmp.ne.s32.totalorder %s47, %s63
      %p65 = scmp.eq.s32.totalorder %s25, 0
      %p66 = por %p64, %p65
      %s68 = sadd.s32 %s67, 1
      %p71 = scmp.eq.s32.totalorder %s19, 1
      %p72 = scmp.ne.s32.totalorder %s67, %s69
      %p73 = scmp.eq.s32.totalorder %s19, 0
      %p74 = por %p72, %p73
      %p75 = scmp.ne.s32.totalorder %s67, %s69
      %p76 = scmp.eq.s32.totalorder %s24, 1
      %p77 = por %p75, %p76
      %p78 = scmp.ne.s32.totalorder %s69, %s70
      %p79 = scmp.eq.s32.totalorder %s24, 0
      %p80 = por %p78, %p79
      %p81 = scmp.ne.s32.totalorder %s69, %s70
      %p82 = scmp.eq.s32.totalorder %s25, 1
      %p83 = por %p81, %p82
      %p85 = scmp.ne.s32.totalorder %s70, %s84
      %p86 = scmp.eq.s32.totalorder %s25, 0
      %p87 = por %p85, %p86
      %s89 = sadd.s32 %s88, 1
      %p92 = scmp.eq.s32.totalorder %s19, 1
      %p93 = scmp.ne.s32.totalorder %s88, %s90
      %p94 = scmp.eq.s32.totalorder %s19, 0
      %p95 = por %p93, %p94
      %p96 = scmp.ne.s32.totalorder %s88, %s90
      %p97 = scmp.eq.s32.totalorder %s24, 1
      %p98 = por %p96, %p97
      %p99 = scmp.ne.s32.totalorder %s90, %s91
      %p100 = scmp.eq.s32.totalorder %s24, 0
      %p101 = por %p99, %p100
      %p102 = scmp.ne.s32.totalorder %s90, %s91
      %p103 = scmp.eq.s32.totalorder %s25, 1
      %p104 = por %p102, %p103
      %p106 = scmp.ne.s32.totalorder %s91, %s105
      %p107 = scmp.eq.s32.totalorder %s25, 0
      %p108 = por %p106, %p107
      %s110 = sadd.s32 %s109, 1
      %p113 = scmp.eq.s32.totalorder %s19, 1
      %p114 = scmp.ne.s32.totalorder %s109, %s111
      %p115 = scmp.eq.s32.totalorder %s19, 0
      %p116 = por %p114, %p115
      %p117 = scmp.ne.s32.totalorder %s109, %s111
      %p118 = scmp.eq.s32.totalorder %s24, 1
      %p119 = por %p117, %p118
      %p120 = scmp.ne.s32.totalorder %s111, %s112
      %p121 = scmp.eq.s32.totalorder %s24, 0
      %p122 = por %p120, %p121
      %p123 = scmp.ne.s32.totalorder %s111, %s112
      %p124 = scmp.eq.s32.totalorder %s25, 1
      %p125 = por %p123, %p124
      %p127 = scmp.ne.s32.totalorder %s112, %s126
      %p128 = scmp.eq.s32.totalorder %s25, 0
      %p129 = por %p127, %p128
      %s131 = sadd.s32 %s130, 1
      %p134 = scmp.eq.s32.totalorder %s19, 1
      %p135 = scmp.ne.s32.totalorder %s130, %s132
      %p136 = scmp.eq.s32.totalorder %s19, 0
      %p137 = por %p135, %p136
      %p138 = scmp.ne.s32.totalorder %s130, %s132
      %p139 = scmp.eq.s32.totalorder %s24, 1
      %p140 = por %p138, %p139
      %p141 = scmp.ne.s32.totalorder %s132, %s133
      %p142 = scmp.eq.s32.totalorder %s24, 0
      %p143 = por %p141, %p142
      %p144 = scmp.ne.s32.totalorder %s132, %s133
      %p145 = scmp.eq.s32.totalorder %s25, 1
      %p146 = por %p144, %p145
      %p148 = scmp.ne.s32.totalorder %s133, %s147
      %p149 = scmp.eq.s32.totalorder %s25, 0
      %p150 = por %p148, %p149
      %s152 = sadd.s32 %s151, 1
      %p155 = scmp.eq.s32.totalorder %s19, 1
      %p156 = scmp.ne.s32.totalorder %s151, %s153
      %p157 = scmp.eq.s32.totalorder %s19, 0
      %p158 = por %p156, %p157
      %p159 = scmp.ne.s32.totalorder %s151, %s153
      %p160 = scmp.eq.s32.totalorder %s24, 1
      %p161 = por %p159, %p160
      %p162 = scmp.ne.s32.totalorder %s153, %s154
      %p163 = scmp.eq.s32.totalorder %s24, 0
      %p164 = por %p162, %p163
      %p165 = scmp.ne.s32.totalorder %s153, %s154
      %p166 = scmp.eq.s32.totalorder %s25, 1
      %p167 = por %p165, %p166
      %p169 = scmp.ne.s32.totalorder %s154, %s168
      %p170 = scmp.eq.s32.totalorder %s25, 0
      %p171 = por %p169, %p170
      %s173 = sadd.s32 %s172, 1
      %p176 = scmp.eq.s32.totalorder %s19, 1
      %p177 = scmp.ne.s32.totalorder %s172, %s174
      %p178 = scmp.eq.s32.totalorder %s19, 0
      %p179 = por %p177, %p178
      %p180 = scmp.ne.s32.totalorder %s172, %s174
      %p181 = scmp.eq.s32.totalorder %s24, 1
      %p182 = por %p180, %p181
      %p183 = scmp.ne.s32.totalorder %s174, %s175
      %p184 = scmp.eq.s32.totalorder %s24, 0
      %p185 = por %p183, %p184
      %p186 = scmp.ne.s32.totalorder %s174, %s175
      %p187 = scmp.eq.s32.totalorder %s25, 1
      %p188 = por %p186, %p187
      %p190 = scmp.ne.s32.totalorder %s175, %s189
      %p191 = scmp.eq.s32.totalorder %s25, 0
      %p192 = por %p190, %p191
      %s194 = sadd.s32 %s193, 1
      %p197 = scmp.eq.s32.totalorder %s19, 1
      %p198 = scmp.ne.s32.totalorder %s193, %s195
      %p199 = scmp.eq.s32.totalorder %s19, 0
      %p200 = por %p198, %p199
      %p201 = scmp.ne.s32.totalorder %s193, %s195
      %p202 = scmp.eq.s32.totalorder %s24, 1
      %p203 = por %p201, %p202
      %p204 = scmp.ne.s32.totalorder %s195, %s196
      %p205 = scmp.eq.s32.totalorder %s24, 0
      %p206 = por %p204, %p205
      %p207 = scmp.ne.s32.totalorder %s195, %s196
      %p208 = scmp.eq.s32.totalorder %s25, 1
      %p209 = por %p207, %p208
      %p211 = scmp.ne.s32.totalorder %s196, %s210
      %p212 = scmp.eq.s32.totalorder %s25, 0
      %p213 = por %p211, %p212
      %s215 = sadd.s32 %s214, 1
      %p218 = scmp.eq.s32.totalorder %s19, 1
      %p219 = scmp.ne.s32.totalorder %s214, %s216
      %p220 = scmp.eq.s32.totalorder %s19, 0
      %p221 = por %p219, %p220
      %p222 = scmp.ne.s32.totalorder %s214, %s216
      %p223 = scmp.eq.s32.totalorder %s24, 1
      %p224 = por %p222, %p223
      %p225 = scmp.ne.s32.totalorder %s216, %s217
      %p226 = scmp.eq.s32.totalorder %s24, 0
      %p227 = por %p225, %p226
      %p228 = scmp.ne.s32.totalorder %s216, %s217
      %p229 = scmp.eq.s32.totalorder %s25, 1
      %p230 = por %p228, %p229
      %p232 = scmp.ne.s32.totalorder %s217, %s231
      %p233 = scmp.eq.s32.totalorder %s25, 0
      %p234 = por %p232, %p233
      %s235 = ssub.s32 %s26, %s38
      %s236 = ssub.s32 %s27, %s34
      %s237 = sor.u32 %s235, %s236
      %p238 = scmp.eq.s32.totalorder %s237, 0
      %s240 = sadd.s32 %s239, 1
      %s241 = scalar_select %p238, %s239, %s240
      %p244 = pneg %p238
      %p245 = scmp.eq.s32.totalorder %s19, 1
      %p246 = por %p244, %p245
      %p247 = scmp.ne.s32.totalorder %s239, %s242
      %p248 = scmp.eq.s32.totalorder %s19, 0
      %p249 = por %p247, %p248
      %p250 = scmp.ne.s32.totalorder %s239, %s242
      %p251 = scmp.eq.s32.totalorder %s24, 1
      %p252 = por %p250, %p251
      %p253 = scmp.ne.s32.totalorder %s242, %s243
      %p254 = scmp.eq.s32.totalorder %s24, 0
      %p255 = por %p253, %p254
      %p256 = scmp.ne.s32.totalorder %s242, %s243
      %p257 = scmp.eq.s32.totalorder %s25, 1
      %p258 = por %p256, %p257
      %p260 = scmp.ne.s32.totalorder %s243, %s259
      %p261 = scmp.eq.s32.totalorder %s25, 0
      %p262 = por %p260, %p261
      %p263 = scmp.le.s32.totalorder 1, %s19
      %p264 = scmp.lt.s32.totalorder %s19, 3
      %p265 = pnand %p263, %p264
      %p266 = pneg %p265
      // Predicated region
      $region9: #{tpu_custom_call.1} parent=5 // pred_check
        _
      $region10: #{tpu_custom_call.1} parent=5 // pred_check_branch
        %268 = sbr.rel (%p265) target = $region12
      $region11: #{tpu_custom_call.1} parent=5 // pred_region
        %s269 = ssub.s32 %s19, 1
        // Predicated region
        $region13: #{tpu_custom_call.1} parent=11 // pred_check
          %p270 = pneg %p80
        $region14: #{tpu_custom_call.1} parent=11 // pred_check_branch
          %272 = sbr.rel (%p270) target = $region16
        $region15: #{tpu_custom_call.1} parent=11 // pred_region
          _
        $region16: #{tpu_custom_call.1} parent=11 // pred_fallthru
          _
        // Predicated region
        $region17: #{tpu_custom_call.1} parent=11 // pred_check
          %p273 = pneg %p101
        $region18: #{tpu_custom_call.1} parent=11 // pred_check_branch
          %275 = sbr.rel (%p273) target = $region20
        $region19: #{tpu_custom_call.1} parent=11 // pred_region
          _
        $region20: #{tpu_custom_call.1} parent=11 // pred_fallthru
          _
        // Predicated region
        $region21: #{tpu_custom_call.1} parent=11 // pred_check
          %p276 = pneg %p122
        $region22: #{tpu_custom_call.1} parent=11 // pred_check_branch
          %278 = sbr.rel (%p276) target = $region24
        $region23: #{tpu_custom_call.1} parent=11 // pred_region
          _
        $region24: #{tpu_custom_call.1} parent=11 // pred_fallthru
          _
        // Predicated region
        $region25: #{tpu_custom_call.1} parent=11 // pred_check
          %p279 = pneg %p143
        $region26: #{tpu_custom_call.1} parent=11 // pred_check_branch
          %281 = sbr.rel (%p279) target = $region28
        $region27: #{tpu_custom_call.1} parent=11 // pred_region
          _
        $region28: #{tpu_custom_call.1} parent=11 // pred_fallthru
          _
        // Predicated region
        $region29: #{tpu_custom_call.1} parent=11 // pred_check
          %p282 = pneg %p164
        $region30: #{tpu_custom_call.1} parent=11 // pred_check_branch
          %284 = sbr.rel (%p282) target = $region32
        $region31: #{tpu_custom_call.1} parent=11 // pred_region
          %s286 = ssub.s32 2048, 2048
          %287 = vsyncadd [#allocation3], %s286
          %s288 = sshll.u32 [#allocation2], 4
          %s289 = int_to_ptr.vmem [resolvable:$true] %s288
          %294 = dma.hbm_to_vmem [thread:$0]  %s5, 2048, %s289, [#allocation3], 128, 128, 8
        $region32: #{tpu_custom_call.1} parent=11 // pred_fallthru
          _
        // Predicated region
        $region33: #{tpu_custom_call.1} parent=11 // pred_check
          %p295 = pneg %p185
        $region34: #{tpu_custom_call.1} parent=11 // pred_check_branch
          %297 = sbr.rel (%p295) target = $region36
        $region35: #{tpu_custom_call.1} parent=11 // pred_region
          _
        $region36: #{tpu_custom_call.1} parent=11 // pred_fallthru
          _
        // Predicated region
        $region37: #{tpu_custom_call.1} parent=11 // pred_check
          %p298 = pneg %p206
        $region38: #{tpu_custom_call.1} parent=11 // pred_check_branch
          %300 = sbr.rel (%p298) target = $region40
        $region39: #{tpu_custom_call.1} parent=11 // pred_region
          _
        $region40: #{tpu_custom_call.1} parent=11 // pred_fallthru
          _
        // Predicated region
        $region41: #{tpu_custom_call.1} parent=11 // pred_check
          %p301 = pneg %p227
        $region42: #{tpu_custom_call.1} parent=11 // pred_check_branch
          %303 = sbr.rel (%p301) target = $region44
        $region43: #{tpu_custom_call.1} parent=11 // pred_region
          _
        $region44: #{tpu_custom_call.1} parent=11 // pred_fallthru
          _
      $region12: #{tpu_custom_call.1} parent=5 // pred_fallthru
        _
      %p304 = scmp.lt.s32.totalorder %s19, 2
      // Predicated region
      $region45: #{tpu_custom_call.1} parent=5 // pred_check
        %p305 = pneg %p304
      $region46: #{tpu_custom_call.1} parent=5 // pred_check_branch
        %307 = sbr.rel (%p305) target = $region48
      $region47: #{tpu_custom_call.1} parent=5 // pred_region
        // Predicated region
        $region49: #{tpu_custom_call.1} parent=47 // pred_check
          %p308 = pneg %p53
        $region50: #{tpu_custom_call.1} parent=47 // pred_check_branch
          %310 = sbr.rel (%p308) target = $region52
        $region51: #{tpu_custom_call.1} parent=47 // pred_region
          %p311 = scmp.lt.s32.totalorder %s26, 1
          %s312 = scalar_select %p311, %s26, 1
          %p313 = scmp.lt.s32.totalorder %s27, 0
          %s314 = scalar_select %p313, %s27, 0
          %s315 = smul.addr %s314, 3
          %s316 = smul.addr %s312, 3
          %s317 = sadd.s32 %s315, %s316
          %s318 = smul.addr %s317, 8
          %s319 = scalar_lea.vmem %s0, %s318
        $region52: #{tpu_custom_call.1} parent=47 // pred_fallthru
          _
      $region48: #{tpu_custom_call.1} parent=5 // pred_fallthru
        _
      %p320 = scmp.le.s32.totalorder 1, %s19
      %p321 = scmp.lt.s32.totalorder %s19, 3
      %p322 = pnand %p320, %p321
      %p323 = pneg %p322
      // Predicated region
      $region53: #{tpu_custom_call.1} parent=5 // pred_check
        _
      $region54: #{tpu_custom_call.1} parent=5 // pred_check_branch
        %325 = sbr.rel (%p322) target = $region56
      $region55: #{tpu_custom_call.1} parent=5 // pred_region
        %s326 = ssub.s32 %s19, 1
        // Predicated region
        $region57: #{tpu_custom_call.1} parent=55 // pred_check
          %p327 = pneg %p164
        $region58: #{tpu_custom_call.1} parent=55 // pred_check_branch
          %329 = sbr.rel (%p327) target = $region60
        $region59: #{tpu_custom_call.1} parent=55 // pred_region
          %330 = dma.done [#allocation3], 2048
        $region60: #{tpu_custom_call.1} parent=55 // pred_fallthru
          _
        %p331 = scmp.lt.s32.totalorder %s28, 1
        %s332 = scalar_select %p331, %s28, 1
        %p333 = scmp.lt.s32.totalorder %s29, 0
        %s334 = scalar_select %p333, %s29, 0
        %s335 = smul.addr %s334, 3
        %s336 = smul.addr %s332, 3
        %s337 = sadd.s32 %s335, %s336
        %s338 = smul.addr %s337, 8
        %s339 = scalar_lea.vmem %s0, %s338
        %p340 = pneg %p59
        %p341 = pneg %p56
        %p342 = pneg %p80
        %p343 = pneg %p77
        %p344 = pneg %p101
        %p345 = pneg %p98
        %p346 = pneg %p122
        %p347 = pneg %p119
        %p348 = pneg %p143
        %p349 = pneg %p140
        %p350 = pneg %p164
        %p351 = pneg %p161
        %p352 = pneg %p185
        %p353 = pneg %p182
        %p354 = pneg %p206
        %p355 = pneg %p203
        %p356 = pneg %p227
        %p357 = pneg %p224
        %p358 = pneg %p255
        %p359 = pneg %p252
        %s360 = sand.u32 %s242, 1
        %s361 = scalar_lea.sflag [#allocation4], %s360
        %s362 = sand.u32 %s242, 1
        %s363 = smul.addr %s362, 16
        %s364 = scalar_lea.vmem [#allocation5], %s363
        %p365 = scmp.lt.s32.totalorder %s28, 1
        %s366 = scalar_select %p365, %s28, 1
        %p367 = scmp.lt.s32.totalorder %s29, 0
        %s368 = scalar_select %p367, %s29, 0
        %s369 = smul.addr %s368, 3
        %s370 = smul.addr %s366, 3
        %s371 = sadd.s32 %s369, %s370
        %s372 = smul.addr %s371, 8
        %s373 = scalar_lea.vmem %s0, %s372
        %s374 = smul.u32 2, %s29
        %v375 = vld [vmem:[%s373] sm:$0xff]
        %v376 = vld [vmem:[%s373 + $0x8] sm:$0xff]
        %v377 = vld [vmem:[%s1] sm:$0x1]
        %v378 = vlaneseq
        %v379 = vshrl.u32 %v378, 7
        %v380 = vsub.s32 0, %v379
        %v381 = vrot.slane %v377, %v380
        %v382 = vmul.f32 %v375, %v381
        %v383 = vmul.f32 %v376, %v381
        %v384 = vld [vmem:[%s373 + $0x1] sm:$0xff]
        %v385 = vld [vmem:[%s373 + $0x9] sm:$0xff]
        %v386 = vld [vmem:[%s1 + $0x1] sm:$0x1]
        %v387 = vlaneseq
        %v388 = vshrl.u32 %v387, 7
        %v389 = vsub.s32 0, %v388
        %v390 = vrot.slane %v386, %v389
        %v391 = vmul.f32 %v384, %v390
        %v392 = vmul.f32 %v385, %v390
        %v393 = vadd.f32 %v382, %v391
        %v394 = vadd.f32 %v383, %v392
        %v395 = vld [vmem:[%s373 + $0x2] sm:$0xff]
        %v396 = vld [vmem:[%s373 + $0xa] sm:$0xff]
        %v397 = vld [vmem:[%s1 + $0x2] sm:$0x1]
        %v398 = vlaneseq
        %v399 = vshrl.u32 %v398, 7
        %v400 = vsub.s32 0, %v399
        %v401 = vrot.slane %v397, %v400
        %v402 = vmul.f32 %v395, %v401
        %v403 = vmul.f32 %v396, %v401
        %v404 = vadd.f32 %v393, %v402
        %v405 = vadd.f32 %v394, %v403
        %v406 = vld [vmem:[%s2] sm:$0x1]
        %v408 = vlaneseq
        %v409 = vshrl.u32 %v408, 7
        %v410 = vsub.s32 0, %v409
        %v411 = vrot.slane %v406, %v410
        %v413 = vadd.f32 %v404, %v411
        %v414 = vadd.f32 %v405, %v411
        %v415 = vmul.f32 %v413, 0.5
        %v416 = vmul.f32 %v414, 0.5
        %v417 = vmul.f32 %v413, 0.70710677
        %v418 = vmul.f32 %v414, 0.70710677
        %v419 = verf.f32.pop %v417
        %v420 = verf.f32.pop %v418
        %v421 = vadd.f32 %v419, 1.0
        %v422 = vadd.f32 %v420, 1.0
        %v423 = vmul.f32 %v415, %v421
        %v424 = vmul.f32 %v416, %v422
        %v425 = vld [vmem:[%s3] sm:$0x1]
        %v426 = vld [vmem:[%s4] sm:$0x1]
        %427 = vadd.xlane.f32.xlu0 %v423
        %v428 = vpop.xlane.xlu0 %427
        %429 = vadd.xlane.f32.xlu0 %v424
        %v430 = vpop.xlane.xlu0 %429
        %v431 = vmul.f32 %v428, 0.125
        %v432 = vmul.f32 %v430, 0.125
        %v433 = vmul.f32 %v423, %v423
        %v434 = vmul.f32 %v424, %v424
        %435 = vadd.xlane.f32.xlu0 %v433
        %v436 = vpop.xlane.xlu0 %435
        %437 = vadd.xlane.f32.xlu0 %v434
        %v438 = vpop.xlane.xlu0 %437
        %v439 = vmul.f32 %v436, 0.125
        %v440 = vmul.f32 %v438, 0.125
        %v441 = vmul.f32 %v431, %v431
        %v442 = vmul.f32 %v432, %v432
        %v443 = vsub.f32 %v439, %v441
        %v444 = vsub.f32 %v440, %v442
        %v445 = vadd.f32 %v443, 1e-05
        %v446 = vadd.f32 %v444, 1e-05
        %v447 = vrsqrt.pop %v445
        %v448 = vrsqrt.pop %v446
        %v449 = vsub.f32 %v423, %v431
        %v450 = vsub.f32 %v424, %v432
        %v451 = vmul.f32 %v449, %v447
        %v452 = vmul.f32 %v450, %v448
        %v454 = vlaneseq
        %v455 = vshrl.u32 %v454, 7
        %v456 = vsub.s32 0, %v455
        %v457 = vrot.slane %v425, %v456
        %v459 = vmul.f32 %v451, %v457
        %v460 = vmul.f32 %v452, %v457
        %v462 = vlaneseq
        %v463 = vshrl.u32 %v462, 7
        %v464 = vsub.s32 0, %v463
        %v465 = vrot.slane %v426, %v464
        %v467 = vadd.f32 %v459, %v465
        %v468 = vadd.f32 %v460, %v465
        %v469 = vld [vmem:[#allocation2] sm:$0xff]
        %v470 = vld [vmem:[#allocation2 + $0x8] sm:$0xff]
        %v471 = vld [vmem:[#allocation2 + $0x10] sm:$0xff]
        %v472 = vld [vmem:[#allocation2 + $0x18] sm:$0xff]
        %v473 = vld [vmem:[#allocation2 + $0x20] sm:$0xff]
        %v474 = vld [vmem:[#allocation2 + $0x28] sm:$0xff]
        %v475 = vld [vmem:[#allocation2 + $0x30] sm:$0xff]
        %v476 = vld [vmem:[#allocation2 + $0x38] sm:$0xff]
        %v477 = vld [vmem:[#allocation2 + $0x40] sm:$0xff]
        %v478 = vld [vmem:[#allocation2 + $0x48] sm:$0xff]
        %v479 = vld [vmem:[#allocation2 + $0x50] sm:$0xff]
        %v480 = vld [vmem:[#allocation2 + $0x58] sm:$0xff]
        %v481 = vld [vmem:[#allocation2 + $0x60] sm:$0xff]
        %v482 = vld [vmem:[#allocation2 + $0x68] sm:$0xff]
        %v483 = vld [vmem:[#allocation2 + $0x70] sm:$0xff]
        %v484 = vld [vmem:[#allocation2 + $0x78] sm:$0xff]
        %v485 = vld [vmem:[%s6] sm:$0x1]
        %v487 = vlaneseq
        %v488 = vshrl.u32 %v487, 7
        %v489 = vsub.s32 0, %v488
        %v490 = vrot.slane %v485, %v489
        %492 = vmatprep.subr.mxu0 0.0
        %493 = vmatpush1.msra.mxu0 %v469
        %494 = vmatprep.subr.mxu0 0.0
        %495 = vmatpush1.msra.mxu0 %v470
        %496 = vmatprep.subr.mxu0 0.0
        %497 = vmatpush1.msra.mxu0 %v471
        %498 = vmatprep.subr.mxu0 0.0
        %499 = vmatpush1.msra.mxu0 %v472
        %500 = vmatprep.subr.mxu0 0.0
        %501 = vmatpush1.msra.mxu0 %v473
        %502 = vmatprep.subr.mxu0 0.0
        %503 = vmatpush1.msra.mxu0 %v474
        %504 = vmatprep.subr.mxu0 0.0
        %505 = vmatpush1.msra.mxu0 %v475
        %506 = vmatprep.subr.mxu0 0.0
        %507 = vmatpush1.msra.mxu0 %v476
        %508 = vmatprep.subr.mxu0 0.0
        %509 = vmatpush1.msra.mxu0 %v477
        %510 = vmatprep.subr.mxu0 0.0
        %511 = vmatpush1.msra.mxu0 %v478
        %512 = vmatprep.subr.mxu0 0.0
        %513 = vmatpush1.msra.mxu0 %v479
        %514 = vmatprep.subr.mxu0 0.0
        %515 = vmatpush1.msra.mxu0 %v480
        %516 = vmatprep.subr.mxu0 0.0
        %517 = vmatpush1.msra.mxu0 %v481
        %518 = vmatprep.subr.mxu0 0.0
        %519 = vmatpush1.msra.mxu0 %v482
        %520 = vmatprep.subr.mxu0 0.0
        %521 = vmatpush1.msra.mxu0 %v483
        %522 = vmatprep.subr.mxu0 0.0
        %523 = vmatpush1.msra.mxu0 %v484
        %524 = vmatprep.subr.mxu0 0.0
        %525 = vmatpush1.msra.mxu0 0.0
        %526 = vmatprep.subr.mxu0 0.0
        %527 = vmatpush1.msra.mxu0 0.0
        %528 = vmatprep.subr.mxu0 0.0
        %529 = vmatpush1.msra.mxu0 0.0
        %530 = vmatprep.subr.mxu0 0.0
        %531 = vmatpush1.msra.mxu0 0.0
        %532 = vmatprep.subr.mxu0 0.0
        %533 = vmatpush1.msra.mxu0 0.0
        %534 = vmatprep.subr.mxu0 0.0
        %535 = vmatpush1.msra.mxu0 0.0
        %536 = vmatprep.subr.mxu0 0.0
        %537 = vmatpush1.msra.mxu0 0.0
        %538 = vmatprep.subr.mxu0 0.0
        %539 = vmatpush1.msra.mxu0 0.0
        %540 = vmatprep.subr.mxu0 0.0
        %541 = vmatpush1.msra.mxu0 0.0
        %542 = vmatprep.subr.mxu0 0.0
        %543 = vmatpush1.msra.mxu0 0.0
        %544 = vmatprep.subr.mxu0 0.0
        %545 = vmatpush1.msra.mxu0 0.0
        %546 = vmatprep.subr.mxu0 0.0
        %547 = vmatpush1.msra.mxu0 0.0
        %548 = vmatprep.subr.mxu0 0.0
        %549 = vmatpush1.msra.mxu0 0.0
        %550 = vmatprep.subr.mxu0 0.0
        %551 = vmatpush1.msra.mxu0 0.0
        %552 = vmatprep.subr.mxu0 0.0
        %553 = vmatpush1.msra.mxu0 0.0
        %554 = vmatprep.subr.mxu0 0.0
        %555 = vmatpush1.msra.mxu0 0.0
        %556 = vmatprep.mubr.f32.mxu0 0.0
        %557 = vmatmul.mubr.f32.gmra.mrb[0].mxu0 %v467
        %v558 = vpop.f32.mrb[0].mxu0
        %v559 = vadd.f32 %v490, %v558
        %v560 = vpop.f32.mrb[0].mxu0
        %561 = vmatprep.mubr.f32.mxu0 0.0
        %562 = vmatmul.mubr.f32.gmra.mrb[0].mxu0 %v468
        %v563 = vpop.f32.mrb[0].mxu0
        %v564 = vadd.f32 %v490, %v563
        %v565 = vpop.f32.mrb[0].mxu0
        %566 = vdwg.mxu0
        %v567 = vmul.f32 %v559, 0.5
        %v568 = vmul.f32 %v564, 0.5
        %v569 = vmul.f32 %v559, 0.70710677
        %v570 = vmul.f32 %v564, 0.70710677
        %v571 = verf.f32.pop %v569
        %v572 = verf.f32.pop %v570
        %v573 = vadd.f32 %v571, 1.0
        %v574 = vadd.f32 %v572, 1.0
        %v575 = vmul.f32 %v567, %v573
        %v576 = vmul.f32 %v568, %v574
        %v577 = vld [vmem:[%s7] sm:$0x1]
        %v578 = vld [vmem:[%s8] sm:$0x1]
        %579 = vadd.xlane.f32.xlu0 %v575
        %v580 = vpop.xlane.xlu0 %579
        %581 = vadd.xlane.f32.xlu0 %v576
        %v582 = vpop.xlane.xlu0 %581
        %v583 = vmul.f32 %v580, 0.0625
        %v584 = vmul.f32 %v582, 0.0625
        %v585 = vmul.f32 %v575, %v575
        %v586 = vmul.f32 %v576, %v576
        %587 = vadd.xlane.f32.xlu0 %v585
        %v588 = vpop.xlane.xlu0 %587
        %589 = vadd.xlane.f32.xlu0 %v586
        %v590 = vpop.xlane.xlu0 %589
        %v591 = vmul.f32 %v588, 0.0625
        %v592 = vmul.f32 %v590, 0.0625
        %v593 = vmul.f32 %v583, %v583
        %v594 = vmul.f32 %v584, %v584
        %v595 = vsub.f32 %v591, %v593
        %v596 = vsub.f32 %v592, %v594
        %v597 = vadd.f32 %v595, 1e-05
        %v598 = vadd.f32 %v596, 1e-05
        %v599 = vrsqrt.pop %v597
        %v600 = vrsqrt.pop %v598
        %v601 = vsub.f32 %v575, %v583
        %v602 = vsub.f32 %v576, %v584
        %v603 = vmul.f32 %v601, %v599
        %v604 = vmul.f32 %v602, %v600
        %v606 = vlaneseq
        %v607 = vshrl.u32 %v606, 7
        %v608 = vsub.s32 0, %v607
        %v609 = vrot.slane %v577, %v608
        %v611 = vmul.f32 %v603, %v609
        %v612 = vmul.f32 %v604, %v609
        %v614 = vlaneseq
        %v615 = vshrl.u32 %v614, 7
        %v616 = vsub.s32 0, %v615
        %v617 = vrot.slane %v578, %v616
        %v619 = vadd.f32 %v611, %v617
        %v620 = vadd.f32 %v612, %v617
        %621 = vst [vmem:[%s364] sm:$0xff] %v619
        %622 = vst [vmem:[%s364 + $0x8] sm:$0xff] %v620
        %s623 = sand.u32 %s242, 1
        %s624 = scalar_lea.sflag [#allocation4], %s623
        %s625 = sand.u32 %s242, 1
        %s626 = smul.addr %s625, 16
        %s627 = scalar_lea.vmem [#allocation5], %s626
        // Predicated region
        $region61: #{tpu_custom_call.1} parent=55 // pred_check
          %p628 = pneg %p252
        $region62: #{tpu_custom_call.1} parent=55 // pred_check_branch
          %630 = sbr.rel (%p628) target = $region64
        $region63: #{tpu_custom_call.1} parent=55 // pred_region
          %s631 = smul.u32 2, %s29
          %s633 = ssub.s32 256, 256
          %634 = vsyncadd %s624, %s633
          %s635 = smul.addr %s28, 2
          %s636 = sadd.s32 %s631, %s635
          %s637 = smul.addr %s636, 128
          %s638 = scalar_lea.hbm %s9, %s637
          %s639 = sshll.u32 %s627, 4
          %s640 = int_to_ptr.vmem [resolvable:$true] %s639
          %645 = dma.vmem_to_hbm [thread:$0]  %s640, 256, %s638, %s624, 128, 128, 8
        $region64: #{tpu_custom_call.1} parent=55 // pred_fallthru
          _
      $region56: #{tpu_custom_call.1} parent=5 // pred_fallthru
        _
      %p646 = scmp.le.s32.totalorder 2, %s19
      // Predicated region
      $region65: #{tpu_custom_call.1} parent=5 // pred_check
        %p647 = pneg %p646
      $region66: #{tpu_custom_call.1} parent=5 // pred_check_branch
        %649 = sbr.rel (%p647) target = $region68
      $region67: #{tpu_custom_call.1} parent=5 // pred_region
        %s650 = ssub.s32 %s19, 2
        // Predicated region
        $region69: #{tpu_custom_call.1} parent=67 // pred_check
          %p651 = pneg %p258
        $region70: #{tpu_custom_call.1} parent=67 // pred_check_branch
          %653 = sbr.rel (%p651) target = $region72
        $region71: #{tpu_custom_call.1} parent=67 // pred_region
          %s654 = sand.u32 %s243, 1
          %s655 = scalar_lea.sflag [#allocation4], %s654
          %s656 = sand.u32 %s243, 1
          %s657 = smul.addr %s656, 16
          %s658 = scalar_lea.vmem [#allocation5], %s657
          %659 = dma.done %s655, 256
        $region72: #{tpu_custom_call.1} parent=67 // pred_fallthru
          _
      $region68: #{tpu_custom_call.1} parent=5 // pred_fallthru
        _
    $region6: #{tpu_custom_call.1} parent=1 // loop_footer
      %s23 = sadd.s32 1, %s19
    $region7: #{tpu_custom_call.1} parent=1 // loop_footer_branch
      %18 = sbr.rel target = $region3
    $region8: #{tpu_custom_call.1} parent=1 // loop_exit
      _
    %660 = vsyncpa [#allocation3], 1
    %s661 = scalar_lea.sflag [#allocation3], 1
    %662 = vsyncpa %s661, 1
    %663 = vsyncpa [#allocation4], 1
    %s664 = scalar_lea.sflag [#allocation4], 1
    %665 = vsyncpa %s664, 1

</llo_original>
